<compile_context>
chip_gen: v7x
topology: tpu7x:2x2x1
jax: 0.10.0
libtpu: 0.0.40
codegen_flags: <defaults>
</compile_context>

<pallas_src>
import functools

import jax
import jax.numpy as jnp
from jax.experimental import pallas as pl
from jax.experimental.pallas import tpu as pltpu


def _round_up(x: int, m: int) -> int:
    return (x + m - 1) // m * m


def _weight_computer_kernel(x_ref, w1a_ref, w2_ref, b2_ref, w3_ref, b3_ref,
                            selr_ref, selb_ref, o_ref, *, eps):
    x = x_ref[...]                                   # (F+1, TB)  batch on lanes
    # Layer 1: bias folded into the matmul via the ones row of x.
    h1 = jnp.tanh(jnp.dot(w1a_ref[...], x, preferred_element_type=jnp.float32))
    # Layers 2/3: (H,1)/(JR,1) biases broadcast over lanes.
    h2 = jnp.tanh(jnp.dot(w2_ref[...], h1, preferred_element_type=jnp.float32)
                  + b2_ref[...])
    w = jnp.dot(w3_ref[...], h2, preferred_element_type=jnp.float32) + b3_ref[...]
    wsq = w * w                                      # >= 0, so |w| == w for L1

    # Per-residue L1 denominator via tiny 0/1 selection matmuls on the idle MXU
    # (no sublane-unaligned slices, no XLU shuffles).  Reciprocal stays on the
    # reduced (R, TB) tile to keep EUP work minimal, then is broadcast back.
    red = jnp.dot(selr_ref[...], wsq, preferred_element_type=jnp.float32)      # (R, TB)
    inv = pl.reciprocal(jnp.maximum(red, eps), approx=False)                   # F.normalize eps
    inv_full = jnp.dot(selb_ref[...], inv, preferred_element_type=jnp.float32)  # (JR, TB)

    o_ref[...] = wsq * inv_full                      # single full lane-dense store


def _choose_batch_tile(B, block_b):
    """128-aligned batch tile; >= 2 grid blocks whenever possible (v7x megacore)."""
    cap = max(128, _round_up(block_b, 128))
    b128 = _round_up(B, 128)
    half = max(128, _round_up((b128 + 1) // 2, 128))
    bb = min(cap, half)
    n_blocks = (b128 + bb - 1) // bb
    return bb, n_blocks


@functools.partial(jax.jit, static_argnames=("J", "R", "block_b"))
def weight_computer_forward(f_, params, *, J, R, block_b=8192):
    """f_: (B, F) float32 -> (B, J, R) float32, matching the PyTorch module."""
    w1, b1, w2, b2, w3, b3 = params
    B, F = f_.shape
    H = w1.shape[1]
    JR = J * R
    assert w2.shape == (H, H) and w3.shape == (H, JR)

    bb, n_blocks = _choose_batch_tile(B, block_b)
    Bp = n_blocks * bb
    Fa = F + 1

    # Lane-major input with a ones row appended (folds the layer-1 bias and
    # makes the contraction dim 8-aligned).  Under jit the transpose/concat/pad
    # fuse into a single producer layout pass.
    x_aug = jnp.concatenate(
        [f_.T.astype(jnp.float32), jnp.ones((1, B), jnp.float32)], axis=0)
    x_aug = jnp.pad(x_aug, ((0, 0), (0, Bp - B)))                      # (F+1, Bp)

    # Pre-transposed params (out, in): the matmul N dimension is the batch lanes.
    w1a = jnp.concatenate([w1.T, b1.T], axis=1).astype(jnp.float32)    # (H, F+1)
    w2t = w2.T.astype(jnp.float32)                                     # (H, H)
    b2t = b2.T.astype(jnp.float32)                                     # (H, 1)
    w3t = w3.T.astype(jnp.float32)                                     # (JR, H)
    b3t = b3.T.astype(jnp.float32)                                     # (JR, 1)

    # 0/1 selection matrices for the group-of-J L1 reduction / broadcast-back.
    resid = jnp.arange(JR, dtype=jnp.int32) % R
    sel_r = (resid[None, :] == jnp.arange(R, dtype=jnp.int32)[:, None]
             ).astype(jnp.float32)                                     # (R, JR)
    sel_b = sel_r.T                                                    # (JR, R)

    kernel = functools.partial(_weight_computer_kernel, eps=1e-12)
    out_t = pl.pallas_call(
        kernel,
        out_shape=jax.ShapeDtypeStruct((JR, Bp), jnp.float32),
        grid=(n_blocks,),
        in_specs=[
            pl.BlockSpec((Fa, bb), lambda i: (0, i)),      # batch tile (lanes)
            pl.BlockSpec((H, Fa), lambda i: (0, 0)),       # params: constant
            pl.BlockSpec((H, H), lambda i: (0, 0)),        #   index_maps ->
            pl.BlockSpec((H, 1), lambda i: (0, 0)),        #   DMA'd once,
            pl.BlockSpec((JR, H), lambda i: (0, 0)),       #   VMEM-resident
            pl.BlockSpec((JR, 1), lambda i: (0, 0)),
            pl.BlockSpec((R, JR), lambda i: (0, 0)),
            pl.BlockSpec((JR, R), lambda i: (0, 0)),
        ],
        out_specs=pl.BlockSpec((JR, bb), lambda i: (0, i)),
        compiler_params=pltpu.CompilerParams(
            dimension_semantics=("parallel",),             # megacore split on v7x
            vmem_limit_bytes=32 * 1024 * 1024,             # fits v7x's 64 MiB VMEM
        ),
    )(x_aug, w1a, w2t, b2t, w3t, b3t, sel_r, sel_b)

    # nn.Unflatten(1, (J, R)) + back-transpose; fuses into the consumer layout
    # pass under jit.
    # TODO(synk): negotiate (F,B)/(J*R,B) layouts with the caller so no
    # transpose is materialized at all.
    return out_t[:, :B].T.reshape(B, J, R)


def init_params(key, feature_number=7, J=3, R=5):
    """Deterministic synthetic init mirroring the module's layer shapes."""
    J = J + 1
    k1, k2, k3, k4, k5, k6 = jax.random.split(key, 6)
    # Linear(feature_number, 2J), Linear(2J, 2J), Linear(2J, J*R); stored as (in, out).
    w1 = jax.random.normal(k1, (feature_number, 2 * J), jnp.float32) * 0.3
    b1 = jax.random.normal(k2, (1, 2 * J), jnp.float32) * 0.1
    w2 = jax.random.normal(k3, (2 * J, 2 * J), jnp.float32) * 0.3
    b2 = jax.random.normal(k4, (1, 2 * J), jnp.float32) * 0.1
    w3 = jax.random.normal(k5, (2 * J, J * R), jnp.float32) * 0.3
    b3 = jax.random.normal(k6, (1, J * R), jnp.float32) * 0.1
    return (w1, b1, w2, b2, w3, b3), J, R


def reference_forward(f_, params, *, J, R):
    """Pure-JAX reference replicating the PyTorch forward."""
    w1, b1, w2, b2, w3, b3 = params
    h = jnp.tanh(f_ @ w1 + b1)
    h = jnp.tanh(h @ w2 + b2)
    w = (h @ w3 + b3).reshape(f_.shape[0], J, R)
    w = w * w
    denom = jnp.maximum(jnp.sum(jnp.abs(w), axis=1, keepdims=True), 1e-12)
    return w / denom


if __name__ == "__main__":
    key = jax.random.PRNGKey(0)
    pkey, xkey, xkey2 = jax.random.split(key, 3)

    feature_number = 7
    params, J, R = init_params(pkey, feature_number=feature_number, J=3, R=5)

    # Small demo batch (pads to one 128-lane tile, grid of 1).
    B = 8
    f_ = jax.random.normal(xkey, (B, feature_number), jnp.float32)
    out = jax.block_until_ready(weight_computer_forward(f_, params, J=J, R=R))
    ref = reference_forward(f_, params, J=J, R=R)
    assert out.shape == (B, J, R)
    assert jnp.allclose(out, ref, atol=2e-5, rtol=2e-5), "mismatch vs reference (small B)"

    # Larger, non-multiple-of-128 batch: the tile chooser splits it into >= 2
    # 128-aligned blocks (512 lanes each here), exercising the parallel grid /
    # megacore path and the lane-padding path.
    B2 = 1000
    f2 = jax.random.normal(xkey2, (B2, feature_number), jnp.float32)
    out2 = jax.block_until_ready(weight_computer_forward(f2, params, J=J, R=R))
    ref2 = reference_forward(f2, params, J=J, R=R)
    assert out2.shape == (B2, J, R)
    assert jnp.allclose(out2, ref2, atol=2e-5, rtol=2e-5), "mismatch vs reference (large B)"

    print("KERNEL_OK")
</pallas_src>

<mosaic_0001>
module attributes {stable_mosaic.version = 11 : i64} {
  func.func @_weight_computer_kernel(%arg0: i32, %arg1: memref<8x128xf32, #tpu.memory_space<vmem>>, %arg2: memref<8x8xf32, #tpu.memory_space<vmem>>, %arg3: memref<8x8xf32, #tpu.memory_space<vmem>>, %arg4: memref<8x1xf32, #tpu.memory_space<vmem>>, %arg5: memref<20x8xf32, #tpu.memory_space<vmem>>, %arg6: memref<20x1xf32, #tpu.memory_space<vmem>>, %arg7: memref<5x20xf32, #tpu.memory_space<vmem>>, %arg8: memref<20x5xf32, #tpu.memory_space<vmem>>, %arg9: memref<20x128xf32, #tpu.memory_space<vmem>>) attributes {dimension_semantics = [#tpu.dimension_semantics<parallel>], iteration_bounds = array<i64: 1>, scalar_prefetch = 0 : i64, scratch_operands = 0 : i64, tpu.core_type = #tpu.core_type<tc>, window_params = [{transform_indices = @transform_0, window_bounds = array<i64: 8, 128>}, {pipeline_mode = #tpu.pipeline_mode<synchronous>, transform_indices = @transform_1, window_bounds = array<i64: 8, 8>}, {pipeline_mode = #tpu.pipeline_mode<synchronous>, transform_indices = @transform_2, window_bounds = array<i64: 8, 8>}, {pipeline_mode = #tpu.pipeline_mode<synchronous>, transform_indices = @transform_3, window_bounds = array<i64: 8, 1>}, {pipeline_mode = #tpu.pipeline_mode<synchronous>, transform_indices = @transform_4, window_bounds = array<i64: 20, 8>}, {pipeline_mode = #tpu.pipeline_mode<synchronous>, transform_indices = @transform_5, window_bounds = array<i64: 20, 1>}, {pipeline_mode = #tpu.pipeline_mode<synchronous>, transform_indices = @transform_6, window_bounds = array<i64: 5, 20>}, {pipeline_mode = #tpu.pipeline_mode<synchronous>, transform_indices = @transform_7, window_bounds = array<i64: 20, 5>}, {transform_indices = @transform_8, window_bounds = array<i64: 20, 128>}]} {
    %c0 = arith.constant 0 : index
    %c0_0 = arith.constant 0 : index
    %0 = vector.load %arg1[%c0, %c0_0] : memref<8x128xf32, #tpu.memory_space<vmem>>, vector<8x128xf32>
    %c0_1 = arith.constant 0 : index
    %c0_2 = arith.constant 0 : index
    %1 = vector.load %arg2[%c0_1, %c0_2] : memref<8x8xf32, #tpu.memory_space<vmem>>, vector<8x8xf32>
    %cst = arith.constant dense<0.000000e+00> : vector<8x128xf32>
    %2 = tpu.matmul %1, %0, %cst {dimension_numbers = #tpu.dot_dimension_numbers<[1], [0], [0], [1], [0, 0, 1, 1], [], []>} : vector<8x8xf32>, vector<8x128xf32>, vector<8x128xf32> -> vector<8x128xf32>
    %3 = math.tanh %2 : vector<8x128xf32>
    %c0_3 = arith.constant 0 : index
    %c0_4 = arith.constant 0 : index
    %4 = vector.load %arg3[%c0_3, %c0_4] : memref<8x8xf32, #tpu.memory_space<vmem>>, vector<8x8xf32>
    %cst_5 = arith.constant dense<0.000000e+00> : vector<8x128xf32>
    %5 = tpu.matmul %4, %3, %cst_5 {dimension_numbers = #tpu.dot_dimension_numbers<[1], [0], [0], [1], [0, 0, 1, 1], [], []>} : vector<8x8xf32>, vector<8x128xf32>, vector<8x128xf32> -> vector<8x128xf32>
    %c0_6 = arith.constant 0 : index
    %c0_7 = arith.constant 0 : index
    %6 = vector.load %arg4[%c0_6, %c0_7] : memref<8x1xf32, #tpu.memory_space<vmem>>, vector<8x1xf32>
    %7 = vector.broadcast %6 : vector<8x1xf32> to vector<8x128xf32>
    %8 = arith.addf %5, %7 : vector<8x128xf32>
    %9 = math.tanh %8 : vector<8x128xf32>
    %c0_8 = arith.constant 0 : index
    %c0_9 = arith.constant 0 : index
    %10 = vector.load %arg5[%c0_8, %c0_9] : memref<20x8xf32, #tpu.memory_space<vmem>>, vector<20x8xf32>
    %cst_10 = arith.constant dense<0.000000e+00> : vector<20x128xf32>
    %11 = tpu.matmul %10, %9, %cst_10 {dimension_numbers = #tpu.dot_dimension_numbers<[1], [0], [0], [1], [0, 0, 1, 1], [], []>} : vector<20x8xf32>, vector<8x128xf32>, vector<20x128xf32> -> vector<20x128xf32>
    %c0_11 = arith.constant 0 : index
    %c0_12 = arith.constant 0 : index
    %12 = vector.load %arg6[%c0_11, %c0_12] : memref<20x1xf32, #tpu.memory_space<vmem>>, vector<20x1xf32>
    %13 = vector.broadcast %12 : vector<20x1xf32> to vector<20x128xf32>
    %14 = arith.addf %11, %13 : vector<20x128xf32>
    %15 = arith.mulf %14, %14 : vector<20x128xf32>
    %c0_13 = arith.constant 0 : index
    %c0_14 = arith.constant 0 : index
    %16 = vector.load %arg7[%c0_13, %c0_14] : memref<5x20xf32, #tpu.memory_space<vmem>>, vector<5x20xf32>
    %cst_15 = arith.constant dense<0.000000e+00> : vector<5x128xf32>
    %17 = tpu.matmul %16, %15, %cst_15 {dimension_numbers = #tpu.dot_dimension_numbers<[1], [0], [0], [1], [0, 0, 1, 1], [], []>} : vector<5x20xf32>, vector<20x128xf32>, vector<5x128xf32> -> vector<5x128xf32>
    %cst_16 = arith.constant 9.99999996E-13 : f32
    %18 = vector.broadcast %cst_16 : f32 to vector<5x128xf32>
    %19 = arith.maximumf %17, %18 : vector<5x128xf32>
    %20 = tpu.reciprocal %19 : vector<5x128xf32> -> vector<5x128xf32>
    %c0_17 = arith.constant 0 : index
    %c0_18 = arith.constant 0 : index
    %21 = vector.load %arg8[%c0_17, %c0_18] : memref<20x5xf32, #tpu.memory_space<vmem>>, vector<20x5xf32>
    %cst_19 = arith.constant dense<0.000000e+00> : vector<20x128xf32>
    %22 = tpu.matmul %21, %20, %cst_19 {dimension_numbers = #tpu.dot_dimension_numbers<[1], [0], [0], [1], [0, 0, 1, 1], [], []>} : vector<20x5xf32>, vector<5x128xf32>, vector<20x128xf32> -> vector<20x128xf32>
    %23 = arith.mulf %15, %22 : vector<20x128xf32>
    %c0_20 = arith.constant 0 : index
    %c0_21 = arith.constant 0 : index
    %24 = vector.load %arg9[%c0_20, %c0_21] : memref<20x128xf32, #tpu.memory_space<vmem>>, vector<20x128xf32>
    tpu.vector_store %arg9[%c0_20, %c0_21], %23 {strides = array<i32>} : memref<20x128xf32, #tpu.memory_space<vmem>>, vector<20x128xf32>,
    return
  }
  func.func @transform_0(%arg0: i32) -> (i32, i32) {
    %c0_i32 = arith.constant 0 : i32
    %c0_i32_0 = arith.constant 0 : i32
    return %c0_i32, %arg0 : i32, i32
  }
  func.func @transform_1(%arg0: i32) -> (i32, i32) {
    %c0_i32 = arith.constant 0 : i32
    %c0_i32_0 = arith.constant 0 : i32
    %c0_i32_1 = arith.constant 0 : i32
    return %c0_i32, %c0_i32_0 : i32, i32
  }
  func.func @transform_2(%arg0: i32) -> (i32, i32) {
    %c0_i32 = arith.constant 0 : i32
    %c0_i32_0 = arith.constant 0 : i32
    %c0_i32_1 = arith.constant 0 : i32
    return %c0_i32, %c0_i32_0 : i32, i32
  }
  func.func @transform_3(%arg0: i32) -> (i32, i32) {
    %c0_i32 = arith.constant 0 : i32
    %c0_i32_0 = arith.constant 0 : i32
    %c0_i32_1 = arith.constant 0 : i32
    return %c0_i32, %c0_i32_0 : i32, i32
  }
  func.func @transform_4(%arg0: i32) -> (i32, i32) {
    %c0_i32 = arith.constant 0 : i32
    %c0_i32_0 = arith.constant 0 : i32
    %c0_i32_1 = arith.constant 0 : i32
    return %c0_i32, %c0_i32_0 : i32, i32
  }
  func.func @transform_5(%arg0: i32) -> (i32, i32) {
    %c0_i32 = arith.constant 0 : i32
    %c0_i32_0 = arith.constant 0 : i32
    %c0_i32_1 = arith.constant 0 : i32
    return %c0_i32, %c0_i32_0 : i32, i32
  }
  func.func @transform_6(%arg0: i32) -> (i32, i32) {
    %c0_i32 = arith.constant 0 : i32
    %c0_i32_0 = arith.constant 0 : i32
    %c0_i32_1 = arith.constant 0 : i32
    return %c0_i32, %c0_i32_0 : i32, i32
  }
  func.func @transform_7(%arg0: i32) -> (i32, i32) {
    %c0_i32 = arith.constant 0 : i32
    %c0_i32_0 = arith.constant 0 : i32
    %c0_i32_1 = arith.constant 0 : i32
    return %c0_i32, %c0_i32_0 : i32, i32
  }
  func.func @transform_8(%arg0: i32) -> (i32, i32) {
    %c0_i32 = arith.constant 0 : i32
    %c0_i32_0 = arith.constant 0 : i32
    return %c0_i32, %arg0 : i32, i32
  }
}

</mosaic_0001>

<llo_original>
// kernel: weight_computer_forward.1
$region0: #{weight_computer_forward.1}
  #allocation0 [shape = 'u32[]', space=smem, size = 0x4, offset = 0x4, fixed_abs, tag = 'smem constant byte address 0x4 - core index']
  #allocation1 [shape = 'u32[144,128]{1,0:T(1,128)}', space=vmem, size = 0x12000, scoped, tag = 'internal scratch']
  %s0 = inlined_call_operand.vmem [shape: f32[8,128], index: 0, kind: input, shape index: {}]
  %s1 = inlined_call_operand.vmem [shape: f32[8,8], index: 1, kind: input, shape index: {}]
  %s2 = inlined_call_operand.vmem [shape: f32[8,8], index: 2, kind: input, shape index: {}]
  %s3 = inlined_call_operand.vmem [shape: f32[8,1], index: 3, kind: input, shape index: {}]
  %s4 = inlined_call_operand.vmem [shape: f32[20,8], index: 4, kind: input, shape index: {}]
  %s5 = inlined_call_operand.vmem [shape: f32[20,1], index: 5, kind: input, shape index: {}]
  %s6 = inlined_call_operand.vmem [shape: f32[5,20], index: 6, kind: input, shape index: {}]
  %s7 = inlined_call_operand.vmem [shape: f32[20,5], index: 7, kind: input, shape index: {}]
  %s8 = inlined_call_operand.vmem [shape: f32[20,128], index: 8, kind: output, shape index: {}]
  %s9 = sld [smem:[#allocation0]]
  $region42: #{weight_computer_forward.1} parent=0
    _
  %s11 = ssub.s32 1, %s9
  %s12 = scalar_select 0, %s11, %s9
  // Predicated region
  $region2: #{weight_computer_forward.1} parent=0 // pred_check
    _
  $region3: #{weight_computer_forward.1} parent=0 // pred_check_branch
    %14 = sbr.rel (0) target = $region5
  $region4: #{weight_computer_forward.1} parent=0 // pred_region
    _
  $region5: #{weight_computer_forward.1} parent=0 // pred_fallthru
    _
  // Predicated region
  $region6: #{weight_computer_forward.1} parent=0 // pred_check
    _
  $region7: #{weight_computer_forward.1} parent=0 // pred_check_branch
    %16 = sbr.rel (0) target = $region9
  $region8: #{weight_computer_forward.1} parent=0 // pred_region
    _
  $region9: #{weight_computer_forward.1} parent=0 // pred_fallthru
    _
  // Predicated region
  $region10: #{weight_computer_forward.1} parent=0 // pred_check
    _
  $region11: #{weight_computer_forward.1} parent=0 // pred_check_branch
    %18 = sbr.rel (0) target = $region13
  $region12: #{weight_computer_forward.1} parent=0 // pred_region
    _
  $region13: #{weight_computer_forward.1} parent=0 // pred_fallthru
    _
  // Predicated region
  $region14: #{weight_computer_forward.1} parent=0 // pred_check
    _
  $region15: #{weight_computer_forward.1} parent=0 // pred_check_branch
    %20 = sbr.rel (0) target = $region17
  $region16: #{weight_computer_forward.1} parent=0 // pred_region
    _
  $region17: #{weight_computer_forward.1} parent=0 // pred_fallthru
    _
  // Predicated region
  $region18: #{weight_computer_forward.1} parent=0 // pred_check
    _
  $region19: #{weight_computer_forward.1} parent=0 // pred_check_branch
    %22 = sbr.rel (0) target = $region21
  $region20: #{weight_computer_forward.1} parent=0 // pred_region
    _
  $region21: #{weight_computer_forward.1} parent=0 // pred_fallthru
    _
  // Predicated region
  $region22: #{weight_computer_forward.1} parent=0 // pred_check
    _
  $region23: #{weight_computer_forward.1} parent=0 // pred_check_branch
    %24 = sbr.rel (0) target = $region25
  $region24: #{weight_computer_forward.1} parent=0 // pred_region
    _
  $region25: #{weight_computer_forward.1} parent=0 // pred_fallthru
    _
  // Predicated region
  $region26: #{weight_computer_forward.1} parent=0 // pred_check
    _
  $region27: #{weight_computer_forward.1} parent=0 // pred_check_branch
    %26 = sbr.rel (0) target = $region29
  $region28: #{weight_computer_forward.1} parent=0 // pred_region
    _
  $region29: #{weight_computer_forward.1} parent=0 // pred_fallthru
    _
  // Predicated region
  $region30: #{weight_computer_forward.1} parent=0 // pred_check
    _
  $region31: #{weight_computer_forward.1} parent=0 // pred_check_branch
    %28 = sbr.rel (0) target = $region33
  $region32: #{weight_computer_forward.1} parent=0 // pred_region
    _
  $region33: #{weight_computer_forward.1} parent=0 // pred_fallthru
    _
  %v29 = vld [vmem:[%s0] sm:$0xff]
  %v30 = vld [vmem:[%s1] sm:$0xff]
  %vm31 = vcmask 64512
  %v33 = vsel %vm31, %v30, 0
  %35 = vmatprep.subr.mxu0 0.0
  %36 = vmatpush1.msra.mxu0 %v29
  %37 = vmatprep.subr.mxu0 0.0
  %38 = vmatpush1.msra.mxu0 0.0
  %39 = vmatprep.subr.mxu0 0.0
  %40 = vmatpush1.msra.mxu0 0.0
  %41 = vmatprep.subr.mxu0 0.0
  %42 = vmatpush1.msra.mxu0 0.0
  %43 = vmatprep.subr.mxu0 0.0
  %44 = vmatpush1.msra.mxu0 0.0
  %45 = vmatprep.subr.mxu0 0.0
  %46 = vmatpush1.msra.mxu0 0.0
  %47 = vmatprep.subr.mxu0 0.0
  %48 = vmatpush1.msra.mxu0 0.0
  %49 = vmatprep.subr.mxu0 0.0
  %50 = vmatpush1.msra.mxu0 0.0
  %51 = vmatprep.subr.mxu0 0.0
  %52 = vmatpush1.msra.mxu0 0.0
  %53 = vmatprep.subr.mxu0 0.0
  %54 = vmatpush1.msra.mxu0 0.0
  %55 = vmatprep.subr.mxu0 0.0
  %56 = vmatpush1.msra.mxu0 0.0
  %57 = vmatprep.subr.mxu0 0.0
  %58 = vmatpush1.msra.mxu0 0.0
  %59 = vmatprep.subr.mxu0 0.0
  %60 = vmatpush1.msra.mxu0 0.0
  %61 = vmatprep.subr.mxu0 0.0
  %62 = vmatpush1.msra.mxu0 0.0
  %63 = vmatprep.subr.mxu0 0.0
  %64 = vmatpush1.msra.mxu0 0.0
  %65 = vmatprep.subr.mxu0 0.0
  %66 = vmatpush1.msra.mxu0 0.0
  %67 = vmatprep.subr.mxu0 0.0
  %68 = vmatpush1.msra.mxu0 0.0
  %69 = vmatprep.subr.mxu0 0.0
  %70 = vmatpush1.msra.mxu0 0.0
  %71 = vmatprep.subr.mxu0 0.0
  %72 = vmatpush1.msra.mxu0 0.0
  %73 = vmatprep.subr.mxu0 0.0
  %74 = vmatpush1.msra.mxu0 0.0
  %75 = vmatprep.subr.mxu0 0.0
  %76 = vmatpush1.msra.mxu0 0.0
  %77 = vmatprep.subr.mxu0 0.0
  %78 = vmatpush1.msra.mxu0 0.0
  %79 = vmatprep.subr.mxu0 0.0
  %80 = vmatpush1.msra.mxu0 0.0
  %81 = vmatprep.subr.mxu0 0.0
  %82 = vmatpush1.msra.mxu0 0.0
  %83 = vmatprep.subr.mxu0 0.0
  %84 = vmatpush1.msra.mxu0 0.0
  %85 = vmatprep.subr.mxu0 0.0
  %86 = vmatpush1.msra.mxu0 0.0
  %87 = vmatprep.subr.mxu0 0.0
  %88 = vmatpush1.msra.mxu0 0.0
  %89 = vmatprep.subr.mxu0 0.0
  %90 = vmatpush1.msra.mxu0 0.0
  %91 = vmatprep.subr.mxu0 0.0
  %92 = vmatpush1.msra.mxu0 0.0
  %93 = vmatprep.subr.mxu0 0.0
  %94 = vmatpush1.msra.mxu0 0.0
  %95 = vmatprep.subr.mxu0 0.0
  %96 = vmatpush1.msra.mxu0 0.0
  %97 = vmatprep.subr.mxu0 0.0
  %98 = vmatpush1.msra.mxu0 0.0
  %99 = vmatprep.mubr.f32.mxu0 0.0
  %100 = vmatmul.mubr.f32.gmra.mrb[0].mxu0 %v33
  %v101 = vpop.f32.mrb[0].mxu0
  %v102 = vadd.f32 0.0, %v101
  %v103 = vpop.f32.mrb[0].mxu0
  %104 = vdwg.mxu0
  %v105 = vtanh.pop %v102
  %v106 = vld [vmem:[%s2] sm:$0xff]
  %v107 = vld [vmem:[%s3] sm:$0xff]
  %109 = vset.pattern.permute.xlu0 0
  %110 = vperm.xlu0 %109, %v107
  %v111 = vpop.permute.xlu0 %110
  %v114 = vsel %vm31, %v106, 0
  %116 = vmatprep.subr.mxu0 0.0
  %117 = vmatpush1.msra.mxu0 %v105
  %118 = vmatprep.subr.mxu0 0.0
  %119 = vmatpush1.msra.mxu0 0.0
  %120 = vmatprep.subr.mxu0 0.0
  %121 = vmatpush1.msra.mxu0 0.0
  %122 = vmatprep.subr.mxu0 0.0
  %123 = vmatpush1.msra.mxu0 0.0
  %124 = vmatprep.subr.mxu0 0.0
  %125 = vmatpush1.msra.mxu0 0.0
  %126 = vmatprep.subr.mxu0 0.0
  %127 = vmatpush1.msra.mxu0 0.0
  %128 = vmatprep.subr.mxu0 0.0
  %129 = vmatpush1.msra.mxu0 0.0
  %130 = vmatprep.subr.mxu0 0.0
  %131 = vmatpush1.msra.mxu0 0.0
  %132 = vmatprep.subr.mxu0 0.0
  %133 = vmatpush1.msra.mxu0 0.0
  %134 = vmatprep.subr.mxu0 0.0
  %135 = vmatpush1.msra.mxu0 0.0
  %136 = vmatprep.subr.mxu0 0.0
  %137 = vmatpush1.msra.mxu0 0.0
  %138 = vmatprep.subr.mxu0 0.0
  %139 = vmatpush1.msra.mxu0 0.0
  %140 = vmatprep.subr.mxu0 0.0
  %141 = vmatpush1.msra.mxu0 0.0
  %142 = vmatprep.subr.mxu0 0.0
  %143 = vmatpush1.msra.mxu0 0.0
  %144 = vmatprep.subr.mxu0 0.0
  %145 = vmatpush1.msra.mxu0 0.0
  %146 = vmatprep.subr.mxu0 0.0
  %147 = vmatpush1.msra.mxu0 0.0
  %148 = vmatprep.subr.mxu0 0.0
  %149 = vmatpush1.msra.mxu0 0.0
  %150 = vmatprep.subr.mxu0 0.0
  %151 = vmatpush1.msra.mxu0 0.0
  %152 = vmatprep.subr.mxu0 0.0
  %153 = vmatpush1.msra.mxu0 0.0
  %154 = vmatprep.subr.mxu0 0.0
  %155 = vmatpush1.msra.mxu0 0.0
  %156 = vmatprep.subr.mxu0 0.0
  %157 = vmatpush1.msra.mxu0 0.0
  %158 = vmatprep.subr.mxu0 0.0
  %159 = vmatpush1.msra.mxu0 0.0
  %160 = vmatprep.subr.mxu0 0.0
  %161 = vmatpush1.msra.mxu0 0.0
  %162 = vmatprep.subr.mxu0 0.0
  %163 = vmatpush1.msra.mxu0 0.0
  %164 = vmatprep.subr.mxu0 0.0
  %165 = vmatpush1.msra.mxu0 0.0
  %166 = vmatprep.subr.mxu0 0.0
  %167 = vmatpush1.msra.mxu0 0.0
  %168 = vmatprep.subr.mxu0 0.0
  %169 = vmatpush1.msra.mxu0 0.0
  %170 = vmatprep.subr.mxu0 0.0
  %171 = vmatpush1.msra.mxu0 0.0
  %172 = vmatprep.subr.mxu0 0.0
  %173 = vmatpush1.msra.mxu0 0.0
  %174 = vmatprep.subr.mxu0 0.0
  %175 = vmatpush1.msra.mxu0 0.0
  %176 = vmatprep.subr.mxu0 0.0
  %177 = vmatpush1.msra.mxu0 0.0
  %178 = vmatprep.subr.mxu0 0.0
  %179 = vmatpush1.msra.mxu0 0.0
  %180 = vmatprep.mubr.f32.mxu0 0.0
  %181 = vmatmul.mubr.f32.gmra.mrb[0].mxu0 %v114
  %v182 = vpop.f32.mrb[0].mxu0
  %v183 = vadd.f32 %v111, %v182
  %v184 = vpop.f32.mrb[0].mxu0
  %185 = vdwg.mxu0
  %v186 = vtanh.pop %v183
  %v187 = vld [vmem:[%s4] sm:$0xff]
  %v188 = vld [vmem:[%s4 + $0x8] sm:$0xff]
  %v189 = vld [vmem:[%s4 + $0x10] sm:$0xf]
  %v190 = vld [vmem:[%s5] sm:$0xff]
  %v191 = vld [vmem:[%s5 + $0x8] sm:$0xff]
  %v192 = vld [vmem:[%s5 + $0x10] sm:$0xf]
  %194 = vset.pattern.permute.xlu0 0
  %195 = vperm.xlu0 %194, %v190
  %v196 = vpop.permute.xlu0 %195
  %199 = vset.pattern.permute.xlu0 0
  %200 = vperm.xlu0 %199, %v191
  %v201 = vpop.permute.xlu0 %200
  %204 = vset.pattern.permute.xlu0 0
  %205 = vperm.xlu0 %204, %v192
  %v206 = vpop.permute.xlu0 %205
  %v209 = vsel %vm31, %v187, 0
  %v212 = vsel %vm31, %v188, 0
  %v215 = vsel %vm31, %v189, 0
  %217 = vmatprep.subr.mxu0 0.0
  %218 = vmatpush1.msra.mxu0 %v186
  %219 = vmatprep.subr.mxu0 0.0
  %220 = vmatpush1.msra.mxu0 0.0
  %221 = vmatprep.subr.mxu0 0.0
  %222 = vmatpush1.msra.mxu0 0.0
  %223 = vmatprep.subr.mxu0 0.0
  %224 = vmatpush1.msra.mxu0 0.0
  %225 = vmatprep.subr.mxu0 0.0
  %226 = vmatpush1.msra.mxu0 0.0
  %227 = vmatprep.subr.mxu0 0.0
  %228 = vmatpush1.msra.mxu0 0.0
  %229 = vmatprep.subr.mxu0 0.0
  %230 = vmatpush1.msra.mxu0 0.0
  %231 = vmatprep.subr.mxu0 0.0
  %232 = vmatpush1.msra.mxu0 0.0
  %233 = vmatprep.subr.mxu0 0.0
  %234 = vmatpush1.msra.mxu0 0.0
  %235 = vmatprep.subr.mxu0 0.0
  %236 = vmatpush1.msra.mxu0 0.0
  %237 = vmatprep.subr.mxu0 0.0
  %238 = vmatpush1.msra.mxu0 0.0
  %239 = vmatprep.subr.mxu0 0.0
  %240 = vmatpush1.msra.mxu0 0.0
  %241 = vmatprep.subr.mxu0 0.0
  %242 = vmatpush1.msra.mxu0 0.0
  %243 = vmatprep.subr.mxu0 0.0
  %244 = vmatpush1.msra.mxu0 0.0
  %245 = vmatprep.subr.mxu0 0.0
  %246 = vmatpush1.msra.mxu0 0.0
  %247 = vmatprep.subr.mxu0 0.0
  %248 = vmatpush1.msra.mxu0 0.0
  %249 = vmatprep.subr.mxu0 0.0
  %250 = vmatpush1.msra.mxu0 0.0
  %251 = vmatprep.subr.mxu0 0.0
  %252 = vmatpush1.msra.mxu0 0.0
  %253 = vmatprep.subr.mxu0 0.0
  %254 = vmatpush1.msra.mxu0 0.0
  %255 = vmatprep.subr.mxu0 0.0
  %256 = vmatpush1.msra.mxu0 0.0
  %257 = vmatprep.subr.mxu0 0.0
  %258 = vmatpush1.msra.mxu0 0.0
  %259 = vmatprep.subr.mxu0 0.0
  %260 = vmatpush1.msra.mxu0 0.0
  %261 = vmatprep.subr.mxu0 0.0
  %262 = vmatpush1.msra.mxu0 0.0
  %263 = vmatprep.subr.mxu0 0.0
  %264 = vmatpush1.msra.mxu0 0.0
  %265 = vmatprep.subr.mxu0 0.0
  %266 = vmatpush1.msra.mxu0 0.0
  %267 = vmatprep.subr.mxu0 0.0
  %268 = vmatpush1.msra.mxu0 0.0
  %269 = vmatprep.subr.mxu0 0.0
  %270 = vmatpush1.msra.mxu0 0.0
  %271 = vmatprep.subr.mxu0 0.0
  %272 = vmatpush1.msra.mxu0 0.0
  %273 = vmatprep.subr.mxu0 0.0
  %274 = vmatpush1.msra.mxu0 0.0
  %275 = vmatprep.subr.mxu0 0.0
  %276 = vmatpush1.msra.mxu0 0.0
  %277 = vmatprep.subr.mxu0 0.0
  %278 = vmatpush1.msra.mxu0 0.0
  %279 = vmatprep.subr.mxu0 0.0
  %280 = vmatpush1.msra.mxu0 0.0
  %281 = vmatprep.mubr.f32.mxu0 0.0
  %282 = vmatmul.mubr.f32.gmra.mrb[0].mxu0 %v209
  %v283 = vpop.f32.mrb[0].mxu0
  %v284 = vadd.f32 %v196, %v283
  %v285 = vpop.f32.mrb[0].mxu0
  %286 = vmatprep.mubr.f32.mxu0 0.0
  %287 = vmatmul.mubr.f32.gmra.mrb[0].mxu0 %v212
  %v288 = vpop.f32.mrb[0].mxu0
  %v289 = vadd.f32 %v201, %v288
  %v290 = vpop.f32.mrb[0].mxu0
  %291 = vmatprep.mubr.f32.mxu0 0.0
  %292 = vmatmul.mubr.f32.gmra.mrb[0].mxu0 %v215
  %v293 = vpop.f32.mrb[0].mxu0
  %v294 = vadd.f32 %v206, %v293
  %v295 = vpop.f32.mrb[0].mxu0
  %296 = vdwg.mxu0
  %v297 = vmul.f32 %v284, %v284
  %v298 = vmul.f32 %v289, %v289
  %v299 = vmul.f32 %v294, %v294
  %v300 = vld [vmem:[%s6] sm:$0x1f]
  %vm301 = vcmask 162816
  %v303 = vsel %vm301, %v300, 0
  %vm305 = vcmask 1043456
  %v307 = vsel %vm305, %v299, 0
  %309 = vmatprep.subr.mxu0 0.0
  %310 = vmatpush1.msra.mxu0 %v297
  %311 = vmatprep.subr.mxu0 0.0
  %312 = vmatpush1.msra.mxu0 %v298
  %313 = vmatprep.subr.mxu0 0.0
  %314 = vmatpush1.msra.mxu0 %v307
  %315 = vmatprep.subr.mxu0 0.0
  %316 = vmatpush1.msra.mxu0 0.0
  %317 = vmatprep.subr.mxu0 0.0
  %318 = vmatpush1.msra.mxu0 0.0
  %319 = vmatprep.subr.mxu0 0.0
  %320 = vmatpush1.msra.mxu0 0.0
  %321 = vmatprep.subr.mxu0 0.0
  %322 = vmatpush1.msra.mxu0 0.0
  %323 = vmatprep.subr.mxu0 0.0
  %324 = vmatpush1.msra.mxu0 0.0
  %325 = vmatprep.subr.mxu0 0.0
  %326 = vmatpush1.msra.mxu0 0.0
  %327 = vmatprep.subr.mxu0 0.0
  %328 = vmatpush1.msra.mxu0 0.0
  %329 = vmatprep.subr.mxu0 0.0
  %330 = vmatpush1.msra.mxu0 0.0
  %331 = vmatprep.subr.mxu0 0.0
  %332 = vmatpush1.msra.mxu0 0.0
  %333 = vmatprep.subr.mxu0 0.0
  %334 = vmatpush1.msra.mxu0 0.0
  %335 = vmatprep.subr.mxu0 0.0
  %336 = vmatpush1.msra.mxu0 0.0
  %337 = vmatprep.subr.mxu0 0.0
  %338 = vmatpush1.msra.mxu0 0.0
  %339 = vmatprep.subr.mxu0 0.0
  %340 = vmatpush1.msra.mxu0 0.0
  %341 = vmatprep.subr.mxu0 0.0
  %342 = vmatpush1.msra.mxu0 0.0
  %343 = vmatprep.subr.mxu0 0.0
  %344 = vmatpush1.msra.mxu0 0.0
  %345 = vmatprep.subr.mxu0 0.0
  %346 = vmatpush1.msra.mxu0 0.0
  %347 = vmatprep.subr.mxu0 0.0
  %348 = vmatpush1.msra.mxu0 0.0
  %349 = vmatprep.subr.mxu0 0.0
  %350 = vmatpush1.msra.mxu0 0.0
  %351 = vmatprep.subr.mxu0 0.0
  %352 = vmatpush1.msra.mxu0 0.0
  %353 = vmatprep.subr.mxu0 0.0
  %354 = vmatpush1.msra.mxu0 0.0
  %355 = vmatprep.subr.mxu0 0.0
  %356 = vmatpush1.msra.mxu0 0.0
  %357 = vmatprep.subr.mxu0 0.0
  %358 = vmatpush1.msra.mxu0 0.0
  %359 = vmatprep.subr.mxu0 0.0
  %360 = vmatpush1.msra.mxu0 0.0
  %361 = vmatprep.subr.mxu0 0.0
  %362 = vmatpush1.msra.mxu0 0.0
  %363 = vmatprep.subr.mxu0 0.0
  %364 = vmatpush1.msra.mxu0 0.0
  %365 = vmatprep.subr.mxu0 0.0
  %366 = vmatpush1.msra.mxu0 0.0
  %367 = vmatprep.subr.mxu0 0.0
  %368 = vmatpush1.msra.mxu0 0.0
  %369 = vmatprep.subr.mxu0 0.0
  %370 = vmatpush1.msra.mxu0 0.0
  %371 = vmatprep.subr.mxu0 0.0
  %372 = vmatpush1.msra.mxu0 0.0
  %373 = vmatprep.mubr.f32.mxu0 0.0
  %374 = vmatmul.mubr.f32.gmra.mrb[0].mxu0 %v303
  %v375 = vpop.f32.mrb[0].mxu0
  %v376 = vadd.f32 0.0, %v375
  %v377 = vpop.f32.mrb[0].mxu0
  %378 = vdwg.mxu0
  %v379 = vmax.f32 %v376, 1e-12
  %v380 = vrcp.pop %v379
  %v381 = vld [vmem:[%s7] sm:$0xff]
  %v382 = vld [vmem:[%s7 + $0x8] sm:$0xff]
  %v383 = vld [vmem:[%s7 + $0x10] sm:$0xf]
  %vm384 = vcmask 39936
  %v386 = vsel %vm384, %v381, 0
  %v389 = vsel %vm384, %v382, 0
  %v392 = vsel %vm384, %v383, 0
  %vm394 = vcmask 1044480
  %v396 = vsel %vm394, %v380, 0
  %398 = vmatprep.subr.mxu0 0.0
  %399 = vmatpush1.msra.mxu0 %v396
  %400 = vmatprep.subr.mxu0 0.0
  %401 = vmatpush1.msra.mxu0 0.0
  %402 = vmatprep.subr.mxu0 0.0
  %403 = vmatpush1.msra.mxu0 0.0
  %404 = vmatprep.subr.mxu0 0.0
  %405 = vmatpush1.msra.mxu0 0.0
  %406 = vmatprep.subr.mxu0 0.0
  %407 = vmatpush1.msra.mxu0 0.0
  %408 = vmatprep.subr.mxu0 0.0
  %409 = vmatpush1.msra.mxu0 0.0
  %410 = vmatprep.subr.mxu0 0.0
  %411 = vmatpush1.msra.mxu0 0.0
  %412 = vmatprep.subr.mxu0 0.0
  %413 = vmatpush1.msra.mxu0 0.0
  %414 = vmatprep.subr.mxu0 0.0
  %415 = vmatpush1.msra.mxu0 0.0
  %416 = vmatprep.subr.mxu0 0.0
  %417 = vmatpush1.msra.mxu0 0.0
  %418 = vmatprep.subr.mxu0 0.0
  %419 = vmatpush1.msra.mxu0 0.0
  %420 = vmatprep.subr.mxu0 0.0
  %421 = vmatpush1.msra.mxu0 0.0
  %422 = vmatprep.subr.mxu0 0.0
  %423 = vmatpush1.msra.mxu0 0.0
  %424 = vmatprep.subr.mxu0 0.0
  %425 = vmatpush1.msra.mxu0 0.0
  %426 = vmatprep.subr.mxu0 0.0
  %427 = vmatpush1.msra.mxu0 0.0
  %428 = vmatprep.subr.mxu0 0.0
  %429 = vmatpush1.msra.mxu0 0.0
  %430 = vmatprep.subr.mxu0 0.0
  %431 = vmatpush1.msra.mxu0 0.0
  %432 = vmatprep.subr.mxu0 0.0
  %433 = vmatpush1.msra.mxu0 0.0
  %434 = vmatprep.subr.mxu0 0.0
  %435 = vmatpush1.msra.mxu0 0.0
  %436 = vmatprep.subr.mxu0 0.0
  %437 = vmatpush1.msra.mxu0 0.0
  %438 = vmatprep.subr.mxu0 0.0
  %439 = vmatpush1.msra.mxu0 0.0
  %440 = vmatprep.subr.mxu0 0.0
  %441 = vmatpush1.msra.mxu0 0.0
  %442 = vmatprep.subr.mxu0 0.0
  %443 = vmatpush1.msra.mxu0 0.0
  %444 = vmatprep.subr.mxu0 0.0
  %445 = vmatpush1.msra.mxu0 0.0
  %446 = vmatprep.subr.mxu0 0.0
  %447 = vmatpush1.msra.mxu0 0.0
  %448 = vmatprep.subr.mxu0 0.0
  %449 = vmatpush1.msra.mxu0 0.0
  %450 = vmatprep.subr.mxu0 0.0
  %451 = vmatpush1.msra.mxu0 0.0
  %452 = vmatprep.subr.mxu0 0.0
  %453 = vmatpush1.msra.mxu0 0.0
  %454 = vmatprep.subr.mxu0 0.0
  %455 = vmatpush1.msra.mxu0 0.0
  %456 = vmatprep.subr.mxu0 0.0
  %457 = vmatpush1.msra.mxu0 0.0
  %458 = vmatprep.subr.mxu0 0.0
  %459 = vmatpush1.msra.mxu0 0.0
  %460 = vmatprep.subr.mxu0 0.0
  %461 = vmatpush1.msra.mxu0 0.0
  %462 = vmatprep.mubr.f32.mxu0 0.0
  %463 = vmatmul.mubr.f32.gmra.mrb[0].mxu0 %v386
  %v464 = vpop.f32.mrb[0].mxu0
  %v465 = vadd.f32 0.0, %v464
  %v466 = vpop.f32.mrb[0].mxu0
  %467 = vmatprep.mubr.f32.mxu0 0.0
  %468 = vmatmul.mubr.f32.gmra.mrb[0].mxu0 %v389
  %v469 = vpop.f32.mrb[0].mxu0
  %v470 = vadd.f32 0.0, %v469
  %v471 = vpop.f32.mrb[0].mxu0
  %472 = vmatprep.mubr.f32.mxu0 0.0
  %473 = vmatmul.mubr.f32.gmra.mrb[0].mxu0 %v392
  %v474 = vpop.f32.mrb[0].mxu0
  %v475 = vadd.f32 0.0, %v474
  %v476 = vpop.f32.mrb[0].mxu0
  %477 = vdwg.mxu0
  %v478 = vmul.f32 %v297, %v465
  %v479 = vmul.f32 %v298, %v470
  %v480 = vmul.f32 %v299, %v475
  %481 = vst [vmem:[%s8] sm:$0xff] %v478
  %482 = vst [vmem:[%s8 + $0x8] sm:$0xff] %v479
  %483 = vst [vmem:[%s8 + $0x10] sm:$0xf] %v480
  // Predicated region
  $region34: #{weight_computer_forward.1} parent=0 // pred_check
    _
  $region35: #{weight_computer_forward.1} parent=0 // pred_check_branch
    %485 = sbr.rel (0) target = $region37
  $region36: #{weight_computer_forward.1} parent=0 // pred_region
    _
  $region37: #{weight_computer_forward.1} parent=0 // pred_fallthru
    _
  // Predicated region
  $region38: #{weight_computer_forward.1} parent=0 // pred_check
    _
  $region39: #{weight_computer_forward.1} parent=0 // pred_check_branch
    %487 = sbr.rel (0) target = $region41
  $region40: #{weight_computer_forward.1} parent=0 // pred_region
    _
  $region41: #{weight_computer_forward.1} parent=0 // pred_fallthru
    _

</llo_original>
